<compile_context>
chip_gen: v5e
topology: v5e:2x2
jax: 0.10.0
libtpu: 0.0.40
codegen_flags: <defaults>
</compile_context>

<pallas_src>
import jax
import jax.numpy as jnp
from jax.experimental import pallas as pl
from jax.experimental.pallas import tpu as pltpu

_LANE = 128
_MAX_ROW_TILE = 2048      # 2048*128*4B = 1 MiB per f32 input block
_EPS = 1e-6               # denominator epsilon of the masked mean


def mlbce_loss(pred, target, mask, eps=_EPS):
    """pred/target: [B, C, H, W] probabilities/labels; mask: [B, 1, H, W] or [B, C, H, W]."""
    B, C, H, W = pred.shape
    assert target.shape == pred.shape
    Bm, Cm, Hm, Wm = mask.shape
    assert (Bm, Hm, Wm) == (B, H, W) and Cm in (1, C)

    hw = H * W
    rows = pl.cdiv(hw, _LANE)
    if rows <= _MAX_ROW_TILE:
        row_tile = rows                      # single row-block: block dim == full dim (legal)
        rows_pad = rows
    else:
        row_tile = _MAX_ROW_TILE             # multiple of 8 (legal)
        rows_pad = pl.cdiv(rows, row_tile) * row_tile
    hw_pad = rows_pad * _LANE
    n_row_blocks = rows_pad // row_tile

    def _prep(x):
        # Lane-dense [*, rows_pad, 128] slab.  Reshape is free; the pad (with 0,
        # which contributes 0 to both sums) only happens for awkward H*W.
        x = x.reshape(x.shape[0], x.shape[1], hw)
        if hw_pad != hw:
            x = jnp.pad(x, ((0, 0), (0, 0), (0, hw_pad - hw)))
        return x.reshape(x.shape[0], x.shape[1], rows_pad, _LANE)

    p4 = _prep(pred)      # [B, C,  rows_pad, 128]   native dtype, cast in-kernel
    t4 = _prep(target)    # [B, C,  rows_pad, 128]
    m4 = _prep(mask)      # [B, Cm, rows_pad, 128]

    def _fold(x):
        # (row_tile, 128) -> (1, 128): bulk is vreg adds (VPU); the final 8->1
        # sublane reduce rides the XLU slot (free relative to HBM streaming).
        return jnp.sum(x, axis=0, keepdims=True)

    def _kernel(pred_ref, target_ref, mask_ref, out_ref):
        c = pl.program_id(2)

        @pl.when(c == 0)
        def _init():
            out_ref[...] = jnp.zeros_like(out_ref)

        p = pred_ref[0, 0].astype(jnp.float32)     # (row_tile, 128)
        t = target_ref[0, 0].astype(jnp.float32)
        m = mask_ref[0, 0].astype(jnp.float32)

        # binary_cross_entropy on probabilities, PyTorch-style -100 log clamp.
        log_p = jnp.maximum(jnp.log(p), -100.0)
        log_1mp = jnp.maximum(jnp.log(1.0 - p), -100.0)
        # -(t*log_p + (1-t)*log_1mp), factored to save a multiply per element.
        bce = -(log_1mp + t * (log_p - log_1mp))

        out_ref[0, 0, 0] += _fold(bce * m)         # numerator partial

        if Cm == 1:
            # Shared mask: its sum is identical for every channel; accumulate it
            # once per (b, r) and scale by C outside the kernel.
            @pl.when(c == 0)
            def _den():
                out_ref[0, 0, 1] += _fold(m)
        else:
            out_ref[0, 0, 1] += _fold(m)           # denominator partial

    if Cm == 1:
        mask_map = lambda b, r, c: (b, 0, r, 0)    # same mask tile reused across channels
    else:
        mask_map = lambda b, r, c: (b, c, r, 0)

    parts = pl.pallas_call(
        _kernel,
        out_shape=jax.ShapeDtypeStruct((B, n_row_blocks, 2, 1, _LANE), jnp.float32),
        grid_spec=pltpu.PrefetchScalarGridSpec(
            num_scalar_prefetch=0,
            grid=(B, n_row_blocks, C),             # channel innermost -> mask block stays resident
            in_specs=[
                pl.BlockSpec((1, 1, row_tile, _LANE), lambda b, r, c: (b, c, r, 0)),
                pl.BlockSpec((1, 1, row_tile, _LANE), lambda b, r, c: (b, c, r, 0)),
                pl.BlockSpec((1, 1, row_tile, _LANE), mask_map),
            ],
            out_specs=pl.BlockSpec((1, 1, 2, 1, _LANE),
                                   lambda b, r, c: (b, r, 0, 0, 0)),
        ),
        compiler_params=pltpu.CompilerParams(
            dimension_semantics=("parallel", "parallel", "arbitrary"),
        ),
    )(p4, t4, m4)

    num = jnp.sum(parts[:, :, 0])
    den = jnp.sum(parts[:, :, 1])
    if Cm == 1:
        den = den * C                              # mask broadcast over C channels
    return num / (den + eps)


def _reference(pred, target, mask):
    pred = pred.astype(jnp.float32)
    target = target.astype(jnp.float32)
    mask = jnp.broadcast_to(mask.astype(jnp.float32), pred.shape)
    log_p = jnp.maximum(jnp.log(pred), -100.0)
    log_1mp = jnp.maximum(jnp.log(1.0 - pred), -100.0)
    bce = -(target * log_p + (1.0 - target) * log_1mp)
    return jnp.sum(bce * mask) / (jnp.sum(mask) + _EPS)


def _make_case(key, B, C, H, W, Cm):
    kp, kt, km = jax.random.split(key, 3)
    pred = jax.nn.sigmoid(jax.random.normal(kp, (B, C, H, W), jnp.float32))
    target = (jax.random.uniform(kt, (B, C, H, W)) > 0.5).astype(jnp.float32)
    mask = (jax.random.uniform(km, (B, Cm, H, W)) > 0.3).astype(jnp.float32)
    return pred, target, mask


if __name__ == "__main__":
    key = jax.random.PRNGKey(0)
    k1, k2, k3 = jax.random.split(key, 3)

    ok = True

    # Case 1: spec shape, shared [B,1,H,W] mask.
    pred, target, mask = _make_case(k1, 2, 4, 16, 16, 1)
    loss = jax.block_until_ready(mlbce_loss(pred, target, mask))
    ref = _reference(pred, target, mask)
    ok &= bool(jnp.allclose(loss, ref, rtol=1e-5, atol=1e-5))

    # Case 2: per-channel mask, spatial size a multiple of the (8,128) tile.
    pred, target, mask = _make_case(k2, 1, 3, 32, 32, 3)
    loss = jax.block_until_ready(mlbce_loss(pred, target, mask))
    ref = _reference(pred, target, mask)
    ok &= bool(jnp.allclose(loss, ref, rtol=1e-5, atol=1e-5))

    # Case 3: awkward H*W exercising the zero-pad path.
    pred, target, mask = _make_case(k3, 2, 2, 10, 10, 1)
    loss = jax.block_until_ready(mlbce_loss(pred, target, mask))
    ref = _reference(pred, target, mask)
    ok &= bool(jnp.allclose(loss, ref, rtol=1e-5, atol=1e-5))

    assert ok
    print("KERNEL_OK")
</pallas_src>

<mosaic_0001>
module attributes {stable_mosaic.version = 11 : i64} {
  func.func @_kernel(%arg0: i32, %arg1: i32, %arg2: i32, %arg3: memref<1x1x2x128xf32, #tpu.memory_space<vmem>>, %arg4: memref<1x1x2x128xf32, #tpu.memory_space<vmem>>, %arg5: memref<1x1x2x128xf32, #tpu.memory_space<vmem>>, %arg6: memref<1x1x2x1x128xf32, #tpu.memory_space<vmem>>) attributes {dimension_semantics = [#tpu.dimension_semantics<parallel>, #tpu.dimension_semantics<parallel>, #tpu.dimension_semantics<arbitrary>], iteration_bounds = array<i64: 2, 1, 4>, scalar_prefetch = 0 : i64, scratch_operands = 0 : i64, tpu.core_type = #tpu.core_type<tc>, window_params = [{transform_indices = @transform_0, window_bounds = array<i64: 1, 1, 2, 128>}, {transform_indices = @transform_1, window_bounds = array<i64: 1, 1, 2, 128>}, {transform_indices = @transform_2, window_bounds = array<i64: 1, 1, 2, 128>}, {transform_indices = @transform_3, window_bounds = array<i64: 1, 1, 2, 1, 128>}]} {
    %c0_i32 = arith.constant 0 : i32
    %0 = arith.cmpi eq, %arg2, %c0_i32 : i32
    %1 = arith.extui %0 : i1 to i32
    %c0_i32_0 = arith.constant 0 : i32
    %2 = arith.cmpi ne, %1, %c0_i32_0 : i32
    scf.if %2 {
      %cst_28 = arith.constant 0.000000e+00 : f32
      %34 = vector.broadcast %cst_28 : f32 to vector<1x1x2x1x128xf32>
      %c0_29 = arith.constant 0 : index
      %c0_30 = arith.constant 0 : index
      %c0_31 = arith.constant 0 : index
      %c0_32 = arith.constant 0 : index
      %c0_33 = arith.constant 0 : index
      %35 = vector.load %arg6[%c0_29, %c0_30, %c0_31, %c0_32, %c0_33] : memref<1x1x2x1x128xf32, #tpu.memory_space<vmem>>, vector<1x1x2x1x128xf32>
      tpu.vector_store %arg6[%c0_29, %c0_30, %c0_31, %c0_32, %c0_33], %34 {strides = array<i32>} : memref<1x1x2x1x128xf32, #tpu.memory_space<vmem>>, vector<1x1x2x1x128xf32>,
    } else {
    }
    %c0 = arith.constant 0 : index
    %c0_1 = arith.constant 0 : index
    %c0_2 = arith.constant 0 : index
    %c0_3 = arith.constant 0 : index
    %3 = vector.load %arg3[%c0, %c0_1, %c0_2, %c0_3] : memref<1x1x2x128xf32, #tpu.memory_space<vmem>>, vector<1x1x2x128xf32>
    %4 = vector.shape_cast %3 : vector<1x1x2x128xf32> to vector<2x128xf32>
    %c0_4 = arith.constant 0 : index
    %c0_5 = arith.constant 0 : index
    %c0_6 = arith.constant 0 : index
    %c0_7 = arith.constant 0 : index
    %5 = vector.load %arg4[%c0_4, %c0_5, %c0_6, %c0_7] : memref<1x1x2x128xf32, #tpu.memory_space<vmem>>, vector<1x1x2x128xf32>
    %6 = vector.shape_cast %5 : vector<1x1x2x128xf32> to vector<2x128xf32>
    %c0_8 = arith.constant 0 : index
    %c0_9 = arith.constant 0 : index
    %c0_10 = arith.constant 0 : index
    %c0_11 = arith.constant 0 : index
    %7 = vector.load %arg5[%c0_8, %c0_9, %c0_10, %c0_11] : memref<1x1x2x128xf32, #tpu.memory_space<vmem>>, vector<1x1x2x128xf32>
    %8 = vector.shape_cast %7 : vector<1x1x2x128xf32> to vector<2x128xf32>
    %9 = math.log %4 : vector<2x128xf32>
    %cst = arith.constant -1.000000e+02 : f32
    %10 = vector.broadcast %cst : f32 to vector<2x128xf32>
    %11 = arith.maximumf %9, %10 : vector<2x128xf32>
    %cst_12 = arith.constant 1.000000e+00 : f32
    %12 = vector.broadcast %cst_12 : f32 to vector<2x128xf32>
    %13 = arith.subf %12, %4 : vector<2x128xf32>
    %14 = math.log %13 : vector<2x128xf32>
    %cst_13 = arith.constant -1.000000e+02 : f32
    %15 = vector.broadcast %cst_13 : f32 to vector<2x128xf32>
    %16 = arith.maximumf %14, %15 : vector<2x128xf32>
    %17 = arith.subf %11, %16 : vector<2x128xf32>
    %18 = arith.mulf %6, %17 : vector<2x128xf32>
    %19 = arith.addf %16, %18 : vector<2x128xf32>
    %cst_14 = arith.constant 0.000000e+00 : f32
    %20 = vector.broadcast %cst_14 : f32 to vector<2x128xf32>
    %21 = arith.subf %20, %19 : vector<2x128xf32>
    %c0_15 = arith.constant 0 : index
    %c0_16 = arith.constant 0 : index
    %c0_17 = arith.constant 0 : index
    %c0_18 = arith.constant 0 : index
    %c0_19 = arith.constant 0 : index
    %22 = vector.load %arg6[%c0_15, %c0_16, %c0_17, %c0_18, %c0_19] : memref<1x1x2x1x128xf32, #tpu.memory_space<vmem>>, vector<1x1x1x1x128xf32>
    %23 = vector.shape_cast %22 : vector<1x1x1x1x128xf32> to vector<1x128xf32>
    %24 = arith.mulf %21, %8 : vector<2x128xf32>
    %cst_20 = arith.constant dense<0.000000e+00> : vector<128xf32>
    %25 = vector.multi_reduction <add>, %24, %cst_20 [0] : vector<2x128xf32> to vector<128xf32>
    %26 = vector.shape_cast %25 : vector<128xf32> to vector<1x128xf32>
    %27 = arith.addf %23, %26 : vector<1x128xf32>
    %c0_21 = arith.constant 0 : index
    %c0_22 = arith.constant 0 : index
    %c0_23 = arith.constant 0 : index
    %c0_24 = arith.constant 0 : index
    %c0_25 = arith.constant 0 : index
    %28 = vector.load %arg6[%c0_21, %c0_22, %c0_23, %c0_24, %c0_25] : memref<1x1x2x1x128xf32, #tpu.memory_space<vmem>>, vector<1x1x1x1x128xf32>
    %29 = vector.shape_cast %28 : vector<1x1x1x1x128xf32> to vector<1x128xf32>
    %30 = vector.shape_cast %27 : vector<1x128xf32> to vector<1x1x1x1x128xf32>
    tpu.vector_store %arg6[%c0_21, %c0_22, %c0_23, %c0_24, %c0_25], %30 {strides = array<i32>} : memref<1x1x2x1x128xf32, #tpu.memory_space<vmem>>, vector<1x1x1x1x128xf32>,
    %c0_i32_26 = arith.constant 0 : i32
    %31 = arith.cmpi eq, %arg2, %c0_i32_26 : i32
    %32 = arith.extui %31 : i1 to i32
    %c0_i32_27 = arith.constant 0 : i32
    %33 = arith.cmpi ne, %32, %c0_i32_27 : i32
    scf.if %33 {
      %c0_28 = arith.constant 0 : index
      %c0_29 = arith.constant 0 : index
      %c1 = arith.constant 1 : index
      %c0_30 = arith.constant 0 : index
      %c0_31 = arith.constant 0 : index
      %34 = vector.load %arg6[%c0_28, %c0_29, %c1, %c0_30, %c0_31] : memref<1x1x2x1x128xf32, #tpu.memory_space<vmem>>, vector<1x1x1x1x128xf32>
      %35 = vector.shape_cast %34 : vector<1x1x1x1x128xf32> to vector<1x128xf32>
      %cst_32 = arith.constant dense<0.000000e+00> : vector<128xf32>
      %36 = vector.multi_reduction <add>, %8, %cst_32 [0] : vector<2x128xf32> to vector<128xf32>
      %37 = vector.shape_cast %36 : vector<128xf32> to vector<1x128xf32>
      %38 = arith.addf %35, %37 : vector<1x128xf32>
      %c0_33 = arith.constant 0 : index
      %c0_34 = arith.constant 0 : index
      %c1_35 = arith.constant 1 : index
      %c0_36 = arith.constant 0 : index
      %c0_37 = arith.constant 0 : index
      %39 = vector.load %arg6[%c0_33, %c0_34, %c1_35, %c0_36, %c0_37] : memref<1x1x2x1x128xf32, #tpu.memory_space<vmem>>, vector<1x1x1x1x128xf32>
      %40 = vector.shape_cast %39 : vector<1x1x1x1x128xf32> to vector<1x128xf32>
      %41 = vector.shape_cast %38 : vector<1x128xf32> to vector<1x1x1x1x128xf32>
      tpu.vector_store %arg6[%c0_33, %c0_34, %c1_35, %c0_36, %c0_37], %41 {strides = array<i32>} : memref<1x1x2x1x128xf32, #tpu.memory_space<vmem>>, vector<1x1x1x1x128xf32>,
    } else {
    }
    return
  }
  func.func @transform_0(%arg0: i32, %arg1: i32, %arg2: i32) -> (i32, i32, i32, i32) {
    %c0_i32 = arith.constant 0 : i32
    %c0_i32_0 = arith.constant 0 : i32
    return %arg0, %arg2, %arg1, %c0_i32 : i32, i32, i32, i32
  }
  func.func @transform_1(%arg0: i32, %arg1: i32, %arg2: i32) -> (i32, i32, i32, i32) {
    %c0_i32 = arith.constant 0 : i32
    %c0_i32_0 = arith.constant 0 : i32
    return %arg0, %arg2, %arg1, %c0_i32 : i32, i32, i32, i32
  }
  func.func @transform_2(%arg0: i32, %arg1: i32, %arg2: i32) -> (i32, i32, i32, i32) {
    %c0_i32 = arith.constant 0 : i32
    %c0_i32_0 = arith.constant 0 : i32
    %c0_i32_1 = arith.constant 0 : i32
    return %arg0, %c0_i32, %arg1, %c0_i32_0 : i32, i32, i32, i32
  }
  func.func @transform_3(%arg0: i32, %arg1: i32, %arg2: i32) -> (i32, i32, i32, i32, i32) {
    %c0_i32 = arith.constant 0 : i32
    %c0_i32_0 = arith.constant 0 : i32
    %c0_i32_1 = arith.constant 0 : i32
    %c0_i32_2 = arith.constant 0 : i32
    return %arg0, %arg1, %c0_i32, %c0_i32_0, %c0_i32_1 : i32, i32, i32, i32, i32
  }
}

</mosaic_0001>

<llo_original>
// kernel: tpu_custom_call.1
$region0: #{tpu_custom_call.1}
  #allocation0 [shape = 'u32[]', space=smem, size = 0x4, offset = 0x4, fixed_abs, tag = 'smem constant byte address 0x4 - core index']
  #allocation1 [shape = 'u32[72,128]{1,0:T(1,128)}', space=vmem, size = 0x9000, scoped, tag = 'internal scratch']
  %s0 = inlined_call_operand.hbm [shape: f32[2,4,2,128], index: 0, kind: input, shape index: {}]
  %s1 = inlined_call_operand.hbm [shape: f32[2,4,2,128], index: 1, kind: input, shape index: {}]
  %s2 = inlined_call_operand.hbm [shape: f32[2,1,2,128], index: 2, kind: input, shape index: {}]
  %s3 = inlined_call_operand.hbm [shape: f32[2,1,2,1,128], index: 3, kind: output, shape index: {}]
  %s4 = sld [smem:[#allocation0]]
  $region65: #{tpu_custom_call.1} parent=0
    _
  %s6 = ssub.s32 1, %s4
  %s7 = scalar_select 0, %s6, %s4
  $region1: #{tpu_custom_call.1} parent=0
    #allocation2 [shape = 'u8[2048]{0}', space=vmem, size = 0x800, scoped, tag = 'input window, operand 0']
    #allocation3 [shape = 's32[2]{0}', space=sflag, size = 0x8, scoped, tag = 'scoped memory for tpu_custom_call.1']
    #allocation4 [shape = 's32[2]{0}', space=sflag, size = 0x8, scoped, tag = 'scoped memory for tpu_custom_call.1']
    #allocation5 [shape = 'u8[2048]{0}', space=vmem, size = 0x800, scoped, tag = 'input window, operand 1']
    #allocation6 [shape = 's32[2]{0}', space=sflag, size = 0x8, scoped, tag = 'scoped memory for tpu_custom_call.1']
    #allocation7 [shape = 'u8[2048]{0}', space=vmem, size = 0x800, scoped, tag = 'input window, operand 2']
    #allocation8 [shape = 'u8[2048]{0}', space=vmem, size = 0x800, scoped, tag = 'output window, operand 0']
    %8 = vsyncpa [#allocation3], 0
    %s9 = scalar_lea.sflag [#allocation3], 1
    %10 = vsyncpa %s9, 0
    %11 = vsyncpa [#allocation6], 0
    %s12 = scalar_lea.sflag [#allocation6], 1
    %13 = vsyncpa %s12, 0
    %14 = vsyncpa [#allocation4], 0
    %s15 = scalar_lea.sflag [#allocation4], 1
    %16 = vsyncpa %s15, 0
    loop: start=0, step=1, limit=10
    $region2: #{tpu_custom_call.1} parent=1 // loop_pre_header
      _
    $region3: #{tpu_custom_call.1} parent=1 // loop_header
      %s18 = sphi 0, %s22
      %p19 = scmp.ge.s32.totalorder %s18, 10
      %s25 = sphi 0, %s44
      %s26 = sphi 0, %s40
      %s27 = sphi 0, %s36
      %s28 = sphi 0, %s25
      %s29 = sphi 0, %s26
      %s30 = sphi 0, %s27
      %s31 = sphi 0, %s28
      %s32 = sphi 0, %s29
      %s33 = sphi 0, %s30
      %s51 = sphi 0, %s53
      %s54 = sphi 0, %s51
      %s55 = sphi 0, %s54
      %s71 = sphi 0, %s55
      %s81 = sphi 0, %s83
      %s84 = sphi 0, %s81
      %s85 = sphi 0, %s84
      %s101 = sphi 0, %s85
      %s109 = sphi 0, %s111
      %s112 = sphi 0, %s109
      %s113 = sphi 0, %s112
      %s129 = sphi 0, %s113
      %s137 = sphi 0, %s139
      %s140 = sphi 0, %s137
      %s141 = sphi 0, %s140
      %s157 = sphi 0, %s141
    $region4: #{tpu_custom_call.1} parent=1 // loop_header_branch
      %21 = sbr.rel (%p19) target = $region8
    $region5: #{tpu_custom_call.1} parent=1 // loop_body
      %s23 = ssub.s32 %s18, 1
      %s24 = ssub.s32 %s18, 2
      %s34 = sadd.s32 1, %s27
      %p35 = scmp.ge.s32.totalorder %s34, 4
      %s36 = scalar_select %p35, 0, %s34
      %s37 = sadd.s32 1, %s26
      %s38 = scalar_select %p35, %s37, %s26
      %p39 = scmp.ge.s32.totalorder %s38, 1
      %s40 = scalar_select %p39, 0, %s38
      %s41 = sadd.s32 1, %s25
      %s42 = scalar_select %p39, %s41, %s25
      %p43 = scmp.ge.s32.totalorder %s42, 2
      %s44 = scalar_select %p43, 0, %s42
      %s45 = ssub.s32 %s25, %s44
      %s46 = ssub.s32 %s27, %s36
      %s47 = sor.u32 %s45, %s46
      %s48 = ssub.s32 %s26, %s40
      %s49 = sor.u32 %s47, %s48
      %p50 = scmp.eq.s32.totalorder %s49, 0
      %s52 = sadd.s32 %s51, 1
      %s53 = scalar_select %p50, %s51, %s52
      %p56 = pneg %p50
      %p57 = scmp.eq.s32.totalorder %s18, 7
      %p58 = por %p56, %p57
      %p59 = scmp.ne.s32.totalorder %s51, %s54
      %p60 = scmp.eq.s32.totalorder %s18, 0
      %p61 = por %p59, %p60
      %p62 = scmp.ne.s32.totalorder %s51, %s54
      %p63 = scmp.eq.s32.totalorder %s23, 7
      %p64 = por %p62, %p63
      %p65 = scmp.ne.s32.totalorder %s54, %s55
      %p66 = scmp.eq.s32.totalorder %s23, 0
      %p67 = por %p65, %p66
      %p68 = scmp.ne.s32.totalorder %s54, %s55
      %p69 = scmp.eq.s32.totalorder %s24, 7
      %p70 = por %p68, %p69
      %p72 = scmp.ne.s32.totalorder %s55, %s71
      %p73 = scmp.eq.s32.totalorder %s24, 0
      %p74 = por %p72, %p73
      %s75 = ssub.s32 %s25, %s44
      %s76 = ssub.s32 %s27, %s36
      %s77 = sor.u32 %s75, %s76
      %s78 = ssub.s32 %s26, %s40
      %s79 = sor.u32 %s77, %s78
      %p80 = scmp.eq.s32.totalorder %s79, 0
      %s82 = sadd.s32 %s81, 1
      %s83 = scalar_select %p80, %s81, %s82
      %p86 = pneg %p80
      %p87 = scmp.eq.s32.totalorder %s18, 7
      %p88 = por %p86, %p87
      %p89 = scmp.ne.s32.totalorder %s81, %s84
      %p90 = scmp.eq.s32.totalorder %s18, 0
      %p91 = por %p89, %p90
      %p92 = scmp.ne.s32.totalorder %s81, %s84
      %p93 = scmp.eq.s32.totalorder %s23, 7
      %p94 = por %p92, %p93
      %p95 = scmp.ne.s32.totalorder %s84, %s85
      %p96 = scmp.eq.s32.totalorder %s23, 0
      %p97 = por %p95, %p96
      %p98 = scmp.ne.s32.totalorder %s84, %s85
      %p99 = scmp.eq.s32.totalorder %s24, 7
      %p100 = por %p98, %p99
      %p102 = scmp.ne.s32.totalorder %s85, %s101
      %p103 = scmp.eq.s32.totalorder %s24, 0
      %p104 = por %p102, %p103
      %s105 = ssub.s32 %s25, %s44
      %s106 = ssub.s32 %s26, %s40
      %s107 = sor.u32 %s105, %s106
      %p108 = scmp.eq.s32.totalorder %s107, 0
      %s110 = sadd.s32 %s109, 1
      %s111 = scalar_select %p108, %s109, %s110
      %p114 = pneg %p108
      %p115 = scmp.eq.s32.totalorder %s18, 7
      %p116 = por %p114, %p115
      %p117 = scmp.ne.s32.totalorder %s109, %s112
      %p118 = scmp.eq.s32.totalorder %s18, 0
      %p119 = por %p117, %p118
      %p120 = scmp.ne.s32.totalorder %s109, %s112
      %p121 = scmp.eq.s32.totalorder %s23, 7
      %p122 = por %p120, %p121
      %p123 = scmp.ne.s32.totalorder %s112, %s113
      %p124 = scmp.eq.s32.totalorder %s23, 0
      %p125 = por %p123, %p124
      %p126 = scmp.ne.s32.totalorder %s112, %s113
      %p127 = scmp.eq.s32.totalorder %s24, 7
      %p128 = por %p126, %p127
      %p130 = scmp.ne.s32.totalorder %s113, %s129
      %p131 = scmp.eq.s32.totalorder %s24, 0
      %p132 = por %p130, %p131
      %s133 = ssub.s32 %s25, %s44
      %s134 = ssub.s32 %s26, %s40
      %s135 = sor.u32 %s133, %s134
      %p136 = scmp.eq.s32.totalorder %s135, 0
      %s138 = sadd.s32 %s137, 1
      %s139 = scalar_select %p136, %s137, %s138
      %p142 = pneg %p136
      %p143 = scmp.eq.s32.totalorder %s18, 7
      %p144 = por %p142, %p143
      %p145 = scmp.ne.s32.totalorder %s137, %s140
      %p146 = scmp.eq.s32.totalorder %s18, 0
      %p147 = por %p145, %p146
      %p148 = scmp.ne.s32.totalorder %s137, %s140
      %p149 = scmp.eq.s32.totalorder %s23, 7
      %p150 = por %p148, %p149
      %p151 = scmp.ne.s32.totalorder %s140, %s141
      %p152 = scmp.eq.s32.totalorder %s23, 0
      %p153 = por %p151, %p152
      %p154 = scmp.ne.s32.totalorder %s140, %s141
      %p155 = scmp.eq.s32.totalorder %s24, 7
      %p156 = por %p154, %p155
      %p158 = scmp.ne.s32.totalorder %s141, %s157
      %p159 = scmp.eq.s32.totalorder %s24, 0
      %p160 = por %p158, %p159
      %p161 = scmp.le.s32.totalorder 1, %s18
      %p162 = scmp.lt.s32.totalorder %s18, 9
      %p163 = pnand %p161, %p162
      %p164 = pneg %p163
      // Predicated region
      $region9: #{tpu_custom_call.1} parent=5 // pred_check
        _
      $region10: #{tpu_custom_call.1} parent=5 // pred_check_branch
        %166 = sbr.rel (%p163) target = $region12
      $region11: #{tpu_custom_call.1} parent=5 // pred_region
        %s167 = ssub.s32 %s18, 1
      $region12: #{tpu_custom_call.1} parent=5 // pred_fallthru
        _
      %p168 = scmp.lt.s32.totalorder %s18, 8
      // Predicated region
      $region13: #{tpu_custom_call.1} parent=5 // pred_check
        %p169 = pneg %p168
      $region14: #{tpu_custom_call.1} parent=5 // pred_check_branch
        %171 = sbr.rel (%p169) target = $region16
      $region15: #{tpu_custom_call.1} parent=5 // pred_region
        // Predicated region
        $region17: #{tpu_custom_call.1} parent=15 // pred_check
          %p172 = pneg %p61
        $region18: #{tpu_custom_call.1} parent=15 // pred_check_branch
          %174 = sbr.rel (%p172) target = $region20
        $region19: #{tpu_custom_call.1} parent=15 // pred_region
          %s175 = sand.u32 %s51, 1
          %s176 = scalar_lea.sflag [#allocation3], %s175
          %s177 = sand.u32 %s51, 1
          %s178 = smul.addr %s177, 2
          %s179 = scalar_lea.vmem [#allocation2], %s178
          %181 = vsyncadd %s176, 0
          %s182 = sadd.s32 %s26, %s27
          %s183 = smul.addr %s25, 4
          %s184 = sadd.s32 %s182, %s183
          %s185 = smul.addr %s184, 2
          %s186 = scalar_lea.hbm %s0, %s185
          %s188 = sshll.u32 %s186, 4
          %s189 = int_to_ptr.hbm [resolvable:$true] %s188
          %s190 = sshll.u32 %s179, 4
          %s191 = int_to_ptr.vmem [resolvable:$true] %s190
          %193 = dma.hbm_to_vmem [thread:$0]  %s189, 32, %s191, %s176
        $region20: #{tpu_custom_call.1} parent=15 // pred_fallthru
          _
        // Predicated region
        $region21: #{tpu_custom_call.1} parent=15 // pred_check
          %p194 = pneg %p91
        $region22: #{tpu_custom_call.1} parent=15 // pred_check_branch
          %196 = sbr.rel (%p194) target = $region24
        $region23: #{tpu_custom_call.1} parent=15 // pred_region
          %s197 = sand.u32 %s18, 1
          %s198 = scalar_lea.sflag [#allocation6], %s197
          %s199 = sand.u32 %s81, 1
          %s200 = smul.addr %s199, 2
          %s201 = scalar_lea.vmem [#allocation5], %s200
          %203 = vsyncadd %s198, 0
          %s204 = sadd.s32 %s26, %s27
          %s205 = smul.addr %s25, 4
          %s206 = sadd.s32 %s204, %s205
          %s207 = smul.addr %s206, 2
          %s208 = scalar_lea.hbm %s1, %s207
          %s210 = sshll.u32 %s208, 4
          %s211 = int_to_ptr.hbm [resolvable:$true] %s210
          %s212 = sshll.u32 %s201, 4
          %s213 = int_to_ptr.vmem [resolvable:$true] %s212
          %215 = dma.hbm_to_vmem [thread:$0]  %s211, 32, %s213, %s198
        $region24: #{tpu_custom_call.1} parent=15 // pred_fallthru
          _
        // Predicated region
        $region25: #{tpu_custom_call.1} parent=15 // pred_check
          %p216 = pneg %p119
        $region26: #{tpu_custom_call.1} parent=15 // pred_check_branch
          %218 = sbr.rel (%p216) target = $region28
        $region27: #{tpu_custom_call.1} parent=15 // pred_region
          %s219 = sand.u32 %s18, 1
          %s220 = scalar_lea.sflag [#allocation6], %s219
          %s221 = sand.u32 %s109, 1
          %s222 = smul.addr %s221, 2
          %s223 = scalar_lea.vmem [#allocation7], %s222
          %225 = vsyncadd %s220, 0
          %s226 = sadd.s32 %s26, %s25
          %s227 = smul.addr %s226, 2
          %s228 = scalar_lea.hbm %s2, %s227
          %s230 = sshll.u32 %s228, 4
          %s231 = int_to_ptr.hbm [resolvable:$true] %s230
          %s232 = sshll.u32 %s223, 4
          %s233 = int_to_ptr.vmem [resolvable:$true] %s232
          %235 = dma.hbm_to_vmem [thread:$0]  %s231, 32, %s233, %s220
        $region28: #{tpu_custom_call.1} parent=15 // pred_fallthru
          _
      $region16: #{tpu_custom_call.1} parent=5 // pred_fallthru
        _
      %p236 = scmp.le.s32.totalorder 1, %s18
      %p237 = scmp.lt.s32.totalorder %s18, 9
      %p238 = pnand %p236, %p237
      %p239 = pneg %p238
      // Predicated region
      $region29: #{tpu_custom_call.1} parent=5 // pred_check
        _
      $region30: #{tpu_custom_call.1} parent=5 // pred_check_branch
        %241 = sbr.rel (%p238) target = $region32
      $region31: #{tpu_custom_call.1} parent=5 // pred_region
        %s242 = ssub.s32 %s18, 1
        %s243 = sand.u32 %s54, 1
        %s244 = scalar_lea.sflag [#allocation3], %s243
        %s245 = sand.u32 %s54, 1
        %s246 = smul.addr %s245, 2
        %s247 = scalar_lea.vmem [#allocation2], %s246
        // Predicated region
        $region33: #{tpu_custom_call.1} parent=31 // pred_check
          %p248 = pneg %p67
        $region34: #{tpu_custom_call.1} parent=31 // pred_check_branch
          %250 = sbr.rel (%p248) target = $region36
        $region35: #{tpu_custom_call.1} parent=31 // pred_region
          %252 = dma.done %s244, 32
        $region36: #{tpu_custom_call.1} parent=31 // pred_fallthru
          _
        %s253 = sand.u32 %s23, 1
        %s254 = scalar_lea.sflag [#allocation6], %s253
        %s255 = sand.u32 %s84, 1
        %s256 = smul.addr %s255, 2
        %s257 = scalar_lea.vmem [#allocation5], %s256
        // Predicated region
        $region37: #{tpu_custom_call.1} parent=31 // pred_check
          %p258 = pneg %p97
        $region38: #{tpu_custom_call.1} parent=31 // pred_check_branch
          %260 = sbr.rel (%p258) target = $region40
        $region39: #{tpu_custom_call.1} parent=31 // pred_region
          %262 = dma.done %s254, 32
        $region40: #{tpu_custom_call.1} parent=31 // pred_fallthru
          _
        %s263 = sand.u32 %s23, 1
        %s264 = scalar_lea.sflag [#allocation6], %s263
        %s265 = sand.u32 %s112, 1
        %s266 = smul.addr %s265, 2
        %s267 = scalar_lea.vmem [#allocation7], %s266
        // Predicated region
        $region41: #{tpu_custom_call.1} parent=31 // pred_check
          %p268 = pneg %p125
        $region42: #{tpu_custom_call.1} parent=31 // pred_check_branch
          %270 = sbr.rel (%p268) target = $region44
        $region43: #{tpu_custom_call.1} parent=31 // pred_region
          %272 = dma.done %s264, 32
        $region44: #{tpu_custom_call.1} parent=31 // pred_fallthru
          _
        %s273 = sand.u32 %s54, 1
        %s274 = scalar_lea.sflag [#allocation3], %s273
        %s275 = sand.u32 %s54, 1
        %s276 = smul.addr %s275, 2
        %s277 = scalar_lea.vmem [#allocation2], %s276
        %p278 = pneg %p67
        %p279 = pneg %p64
        %s280 = sand.u32 %s23, 1
        %s281 = scalar_lea.sflag [#allocation6], %s280
        %s282 = sand.u32 %s84, 1
        %s283 = smul.addr %s282, 2
        %s284 = scalar_lea.vmem [#allocation5], %s283
        %p285 = pneg %p97
        %p286 = pneg %p94
        %s287 = sand.u32 %s23, 1
        %s288 = scalar_lea.sflag [#allocation6], %s287
        %s289 = sand.u32 %s112, 1
        %s290 = smul.addr %s289, 2
        %s291 = scalar_lea.vmem [#allocation7], %s290
        %p292 = pneg %p125
        %p293 = pneg %p122
        %p294 = pneg %p153
        %p295 = pneg %p150
        %s296 = sand.u32 %s140, 1
        %s297 = scalar_lea.sflag [#allocation4], %s296
        %s298 = sand.u32 %s140, 1
        %s299 = smul.addr %s298, 2
        %s300 = scalar_lea.vmem [#allocation8], %s299
        %p301 = scmp.eq.s32.totalorder %s30, 0
        // Predicated region
        $region45: #{tpu_custom_call.1} parent=31 // pred_check
          %p302 = pneg %p301
        $region46: #{tpu_custom_call.1} parent=31 // pred_check_branch
          %304 = sbr.rel (%p302) target = $region48
        $region47: #{tpu_custom_call.1} parent=31 // pred_region
          %305 = vst [vmem:[%s300] sm:$0x1] 0.0
          %306 = vst [vmem:[%s300 + $0x1] sm:$0x1] 0.0
        $region48: #{tpu_custom_call.1} parent=31 // pred_fallthru
          _
        %v307 = vld [vmem:[%s247] sm:$0x3]
        %v308 = vld [vmem:[%s257] sm:$0x3]
        %v309 = vld [vmem:[%s267] sm:$0x3]
        %v310 = vlog2.pop %v307
        %v311 = vmul.f32 %v310, 0.6931472
        %v312 = vmax.f32 %v311, -100.0
        %v313 = vsub.f32 1.0, %v307
        %v314 = vlog2.pop %v313
        %v315 = vmul.f32 %v314, 0.6931472
        %v316 = vmax.f32 %v315, -100.0
        %v317 = vsub.f32 %v312, %v316
        %v318 = vmul.f32 %v308, %v317
        %v319 = vadd.f32 %v316, %v318
        %v320 = vsub.f32 0.0, %v319
        %v321 = vld [vmem:[%s300] sm:$0x1]
        %v322 = vmul.f32 %v320, %v309
        %vm323 = vcmask 1041408
        %v324 = vsel %vm323, %v322, 0.0
        %v325 = vrot.slane %v324, 4
        %v326 = vadd.f32 %v324, %v325
        %v327 = vrot.slane %v326, 2
        %v328 = vadd.f32 %v326, %v327
        %v329 = vrot.slane %v328, 1
        %v330 = vadd.f32 %v328, %v329
        %v331 = vadd.f32 %v321, %v330
        %332 = vst [vmem:[%s300] sm:$0x1] %v331
        // Predicated region
        $region49: #{tpu_custom_call.1} parent=31 // pred_check
          %p333 = pneg %p301
        $region50: #{tpu_custom_call.1} parent=31 // pred_check_branch
          %335 = sbr.rel (%p333) target = $region52
        $region51: #{tpu_custom_call.1} parent=31 // pred_region
          %s336 = scalar_lea.vmem %s300, 1 [#allocation8]
          %v337 = vld [vmem:[%s336] sm:$0x1]
          %v338 = vsel %vm323, %v309, 0.0
          %v339 = vrot.slane %v338, 4
          %v340 = vadd.f32 %v338, %v339
          %v341 = vrot.slane %v340, 2
          %v342 = vadd.f32 %v340, %v341
          %v343 = vrot.slane %v342, 1
          %v344 = vadd.f32 %v342, %v343
          %v345 = vadd.f32 %v337, %v344
          %346 = vst [vmem:[%s336] sm:$0x1] %v345
        $region52: #{tpu_custom_call.1} parent=31 // pred_fallthru
          _
        %s347 = sand.u32 %s140, 1
        %s348 = scalar_lea.sflag [#allocation4], %s347
        %s349 = sand.u32 %s140, 1
        %s350 = smul.addr %s349, 2
        %s351 = scalar_lea.vmem [#allocation8], %s350
        // Predicated region
        $region53: #{tpu_custom_call.1} parent=31 // pred_check
          %p352 = pneg %p150
        $region54: #{tpu_custom_call.1} parent=31 // pred_check_branch
          %354 = sbr.rel (%p352) target = $region56
        $region55: #{tpu_custom_call.1} parent=31 // pred_region
          %356 = vsyncadd %s348, 0
          %s357 = smul.addr %s29, 2
          %s358 = smul.addr %s28, 2
          %s359 = sadd.s32 %s357, %s358
          %s360 = scalar_lea.hbm %s3, %s359
          %s361 = sshll.u32 %s351, 4
          %s362 = int_to_ptr.vmem [resolvable:$true] %s361
          %s363 = sshll.u32 %s360, 4
          %s364 = int_to_ptr.hbm [resolvable:$true] %s363
          %369 = dma.vmem_to_hbm [thread:$0]  %s362, 32, %s364, %s348, 16, 16, 1
        $region56: #{tpu_custom_call.1} parent=31 // pred_fallthru
          _
      $region32: #{tpu_custom_call.1} parent=5 // pred_fallthru
        _
      %p370 = scmp.le.s32.totalorder 2, %s18
      // Predicated region
      $region57: #{tpu_custom_call.1} parent=5 // pred_check
        %p371 = pneg %p370
      $region58: #{tpu_custom_call.1} parent=5 // pred_check_branch
        %373 = sbr.rel (%p371) target = $region60
      $region59: #{tpu_custom_call.1} parent=5 // pred_region
        %s374 = ssub.s32 %s18, 2
        // Predicated region
        $region61: #{tpu_custom_call.1} parent=59 // pred_check
          %p375 = pneg %p156
        $region62: #{tpu_custom_call.1} parent=59 // pred_check_branch
          %377 = sbr.rel (%p375) target = $region64
        $region63: #{tpu_custom_call.1} parent=59 // pred_region
          %s378 = sand.u32 %s141, 1
          %s379 = scalar_lea.sflag [#allocation4], %s378
          %s380 = sand.u32 %s141, 1
          %s381 = smul.addr %s380, 2
          %s382 = scalar_lea.vmem [#allocation8], %s381
          %384 = dma.done %s379, 32
        $region64: #{tpu_custom_call.1} parent=59 // pred_fallthru
          _
      $region60: #{tpu_custom_call.1} parent=5 // pred_fallthru
        _
    $region6: #{tpu_custom_call.1} parent=1 // loop_footer
      %s22 = sadd.s32 1, %s18
    $region7: #{tpu_custom_call.1} parent=1 // loop_footer_branch
      %17 = sbr.rel target = $region3
    $region8: #{tpu_custom_call.1} parent=1 // loop_exit
      _
    %385 = vsyncpa [#allocation3], 1
    %s386 = scalar_lea.sflag [#allocation3], 1
    %387 = vsyncpa %s386, 1
    %388 = vsyncpa [#allocation6], 1
    %s389 = scalar_lea.sflag [#allocation6], 1
    %390 = vsyncpa %s389, 1
    %391 = vsyncpa [#allocation4], 1
    %s392 = scalar_lea.sflag [#allocation4], 1
    %393 = vsyncpa %s392, 1

</llo_original>
